<compile_context>
chip_gen: v7x
topology: tpu7x:2x2x1
jax: 0.10.0
libtpu: 0.0.40
codegen_flags: <defaults>
</compile_context>

<pallas_src>
import math
import functools

import jax
import jax.numpy as jnp
from jax.experimental import pallas as pl
from jax.experimental.pallas import tpu as pltpu


# ---------------------------------------------------------------------------
# pe buffer construction (parameter setup, matches the PyTorch __init__)
# ---------------------------------------------------------------------------
def make_positional_encoding(d_model: int, max_len: int = 5000) -> jnp.ndarray:
    position = jnp.arange(0, max_len, dtype=jnp.float32)[:, None]            # (L, 1)
    div_term = jnp.exp(
        jnp.arange(0, d_model, 2, dtype=jnp.float32) * (-math.log(10000.0) / d_model)
    )                                                                         # (D/2,)
    angles = position * div_term                                              # (L, D/2)
    pe = jnp.zeros((max_len, d_model), dtype=jnp.float32)
    pe = pe.at[:, 0::2].set(jnp.sin(angles))
    pe = pe.at[:, 1::2].set(jnp.cos(angles))
    # unsqueeze(0).transpose(0, 1) -> (max_len, 1, d_model)
    return pe[:, None, :]


# ---------------------------------------------------------------------------
# Pallas kernels
# ---------------------------------------------------------------------------
def _add_pe_kernel(x_ref, pe_ref, o_ref):
    # Broadcast add: pe block is either the same shape as x (2-D path) or
    # (ts, 1, D) broadcasting over the batch sublanes (3-D path).
    o_ref[...] = x_ref[...] + pe_ref[...]


def _add_pe_dropout_kernel(x_ref, pe_ref, u_ref, o_ref, *, p, scale):
    # Inverted dropout (training mode).  u_ref holds uniform [0,1) f32 randoms
    # generated outside the kernel, so the only extra in-kernel VPU work is one
    # compare + one select + one multiply per vreg.
    y = x_ref[...] + pe_ref[...]
    keep = u_ref[...] >= jnp.float32(p)
    o_ref[...] = jnp.where(keep, y * jnp.float32(scale), jnp.zeros_like(y))


# ---------------------------------------------------------------------------
# Tiling helper: ~1 MiB of x per block (safe double-buffered on v5e's 16 MiB
# scoped VMEM and v7x's 64 MiB physical VMEM; amortizes per-step overhead).
# ---------------------------------------------------------------------------
def _pick_seq_tile(S: int, bytes_per_pos: int, target_bytes: int = 1 << 20) -> int:
    ts = max(1, target_bytes // max(1, bytes_per_pos))
    ts = min(int(ts), S)
    if ts >= 8:
        ts -= ts % 8  # keep the sublane axis aligned when ts lands on it
    return max(1, ts)


# ---------------------------------------------------------------------------
# Wrapper
# ---------------------------------------------------------------------------
def positional_encoding_forward(
    x: jnp.ndarray,
    pe: jnp.ndarray,
    *,
    dropout_p: float = 0.1,
    deterministic: bool = True,
    rng_key=None,
) -> jnp.ndarray:
    """x: (S, B, D); pe: (max_len, 1, D).  Returns dropout(x + pe[:S])."""
    S, B, D = x.shape
    itemsize = jnp.dtype(x.dtype).itemsize

    if D % 128 == 0:
        # Real transformer widths: last dim is already lane-dense; keep 3-D and
        # let pe broadcast over batch inside the kernel (no pe materialization).
        x_view = x
        pe_view = pe                               # full table; index_map picks rows
        ts = _pick_seq_tile(S, B * D * itemsize)
        x_block, pe_block = (ts, B, D), (ts, 1, D)
        x_index = lambda i: (i, 0, 0)
        pe_index = lambda i: (i, 0, 0)
    else:
        # Small D (e.g. demo D=32): collapse batch into the lane axis so block
        # stores are denser; pe is pre-tiled over batch (cheap at these sizes).
        x_view = x.reshape(S, B * D)
        pe_view = jnp.broadcast_to(pe[:S], (S, B, D)).reshape(S, B * D)
        ts = _pick_seq_tile(S, B * D * itemsize)
        x_block, pe_block = (ts, B * D), (ts, B * D)
        x_index = lambda i: (i, 0)
        pe_index = lambda i: (i, 0)

    grid = (pl.cdiv(S, ts),)
    x_spec = pl.BlockSpec(x_block, x_index)
    pe_spec = pl.BlockSpec(pe_block, pe_index)
    out_spec = pl.BlockSpec(x_block, x_index)
    out_shape = jax.ShapeDtypeStruct(x_view.shape, x.dtype)
    cparams = pltpu.CompilerParams(dimension_semantics=("parallel",))

    if deterministic or dropout_p == 0.0:
        out = pl.pallas_call(
            _add_pe_kernel,
            grid=grid,
            in_specs=[x_spec, pe_spec],
            out_specs=out_spec,
            out_shape=out_shape,
            compiler_params=cparams,
        )(x_view, pe_view)
    else:
        if rng_key is None:
            rng_key = jax.random.PRNGKey(0)
        # NOTE: reproduces torch dropout *semantics* (Bernoulli(1-p), scale by
        # 1/(1-p)), not torch's exact RNG draws.
        u = jax.random.uniform(rng_key, x_view.shape, dtype=jnp.float32)
        u_spec = pl.BlockSpec(x_block, x_index)
        kernel = functools.partial(
            _add_pe_dropout_kernel,
            p=float(dropout_p),
            scale=1.0 / (1.0 - float(dropout_p)),
        )
        out = pl.pallas_call(
            kernel,
            grid=grid,
            in_specs=[x_spec, pe_spec, u_spec],
            out_specs=out_spec,
            out_shape=out_shape,
            compiler_params=cparams,
        )(x_view, pe_view, u)

    return out.reshape(S, B, D)


# ---------------------------------------------------------------------------
# Demo
# ---------------------------------------------------------------------------
if __name__ == "__main__":
    # Small shapes consistent with the module's (seq, batch, d_model) layout.
    d_model, max_len, seq_len, batch = 32, 64, 8, 2

    key = jax.random.PRNGKey(0)
    kx, kd = jax.random.split(key)
    x = jax.random.normal(kx, (seq_len, batch, d_model), dtype=jnp.float32)
    pe = make_positional_encoding(d_model, max_len)

    # Eval mode (dropout == identity), matches the torch module in .eval().
    out = positional_encoding_forward(x, pe, dropout_p=0.1, deterministic=True)
    out = jax.block_until_ready(out)
    ref = x + pe[:seq_len]
    assert out.shape == (seq_len, batch, d_model)
    assert jnp.allclose(out, ref, atol=1e-6), "eval-mode mismatch vs reference"

    # Training mode: inverted dropout with host-generated uniforms.
    p = 0.1
    out_tr = positional_encoding_forward(
        x, pe, dropout_p=p, deterministic=False, rng_key=kd
    )
    out_tr = jax.block_until_ready(out_tr)
    assert out_tr.shape == (seq_len, batch, d_model)
    kept = out_tr != 0.0
    assert jnp.allclose(
        out_tr[kept], (ref / (1.0 - p))[kept], atol=1e-5, rtol=1e-5
    ), "dropout-mode kept elements mismatch"

    # Also exercise the lane-dense 3-D path (D a multiple of 128).
    d2, s2, b2 = 128, 16, 4
    pe2 = make_positional_encoding(d2, max_len=32)
    x2 = jax.random.normal(jax.random.PRNGKey(1), (s2, b2, d2), dtype=jnp.float32)
    out2 = jax.block_until_ready(
        positional_encoding_forward(x2, pe2, deterministic=True)
    )
    assert jnp.allclose(out2, x2 + pe2[:s2], atol=1e-6), "lane-dense path mismatch"

    print("KERNEL_OK")
</pallas_src>

<mosaic_0001>
module attributes {stable_mosaic.version = 11 : i64} {
  func.func @_add_pe_kernel(%arg0: i32, %arg1: memref<8x64xf32, #tpu.memory_space<vmem>>, %arg2: memref<8x64xf32, #tpu.memory_space<vmem>>, %arg3: memref<8x64xf32, #tpu.memory_space<vmem>>) attributes {dimension_semantics = [#tpu.dimension_semantics<parallel>], iteration_bounds = array<i64: 1>, scalar_prefetch = 0 : i64, scratch_operands = 0 : i64, tpu.core_type = #tpu.core_type<tc>, window_params = [{transform_indices = @transform_0, window_bounds = array<i64: 8, 64>}, {transform_indices = @transform_1, window_bounds = array<i64: 8, 64>}, {transform_indices = @transform_2, window_bounds = array<i64: 8, 64>}]} {
    %c0 = arith.constant 0 : index
    %c0_0 = arith.constant 0 : index
    %0 = vector.load %arg1[%c0, %c0_0] : memref<8x64xf32, #tpu.memory_space<vmem>>, vector<8x64xf32>
    %c0_1 = arith.constant 0 : index
    %c0_2 = arith.constant 0 : index
    %1 = vector.load %arg2[%c0_1, %c0_2] : memref<8x64xf32, #tpu.memory_space<vmem>>, vector<8x64xf32>
    %2 = arith.addf %0, %1 : vector<8x64xf32>
    %c0_3 = arith.constant 0 : index
    %c0_4 = arith.constant 0 : index
    %3 = vector.load %arg3[%c0_3, %c0_4] : memref<8x64xf32, #tpu.memory_space<vmem>>, vector<8x64xf32>
    tpu.vector_store %arg3[%c0_3, %c0_4], %2 {strides = array<i32>} : memref<8x64xf32, #tpu.memory_space<vmem>>, vector<8x64xf32>,
    return
  }
  func.func @transform_0(%arg0: i32) -> (i32, i32) {
    %c0_i32 = arith.constant 0 : i32
    %c0_i32_0 = arith.constant 0 : i32
    return %arg0, %c0_i32 : i32, i32
  }
  func.func @transform_1(%arg0: i32) -> (i32, i32) {
    %c0_i32 = arith.constant 0 : i32
    %c0_i32_0 = arith.constant 0 : i32
    return %arg0, %c0_i32 : i32, i32
  }
  func.func @transform_2(%arg0: i32) -> (i32, i32) {
    %c0_i32 = arith.constant 0 : i32
    %c0_i32_0 = arith.constant 0 : i32
    return %arg0, %c0_i32 : i32, i32
  }
}

</mosaic_0001>

<llo_original>
// kernel: tpu_custom_call.1
$region0: #{tpu_custom_call.1}
  #allocation0 [shape = 'u32[]', space=smem, size = 0x4, offset = 0x4, fixed_abs, tag = 'smem constant byte address 0x4 - core index']
  #allocation1 [shape = 'u32[144,128]{1,0:T(1,128)}', space=vmem, size = 0x12000, scoped, tag = 'internal scratch']
  %s0 = inlined_call_operand.hbm [shape: f32[8,64], index: 0, kind: input, shape index: {}]
  %s1 = inlined_call_operand.hbm [shape: f32[8,64], index: 1, kind: input, shape index: {}]
  %s2 = inlined_call_operand.hbm [shape: f32[8,64], index: 2, kind: output, shape index: {}]
  %s3 = sld [smem:[#allocation0]]
  $region26: #{tpu_custom_call.1} parent=0
    _
  %s5 = ssub.s32 1, %s3
  %s6 = scalar_select 0, %s5, %s3
  $region1: #{tpu_custom_call.1} parent=0
    #allocation2 [shape = 'u8[4096]{0}', space=vmem, size = 0x1000, scoped, tag = 'input window, operand 0, single buffered']
    #allocation3 [shape = 's32[1]{0}', space=sflag, size = 0x4, scoped, tag = 'scoped memory for tpu_custom_call.1']
    #allocation4 [shape = 's32[1]{0}', space=sflag, size = 0x4, scoped, tag = 'scoped memory for tpu_custom_call.1']
    #allocation5 [shape = 'u8[4096]{0}', space=vmem, size = 0x1000, scoped, tag = 'input window, operand 1, single buffered']
    #allocation6 [shape = 's32[1]{0}', space=sflag, size = 0x4, scoped, tag = 'scoped memory for tpu_custom_call.1']
    #allocation7 [shape = 'u8[4096]{0}', space=vmem, size = 0x1000, scoped, tag = 'output window, operand 0, single buffered']
    %7 = vsyncpa [#allocation3], 0
    %8 = vsyncpa [#allocation6], 0
    %9 = vsyncpa [#allocation4], 0
    // Predicated region
    $region2: #{tpu_custom_call.1} parent=1 // pred_check
      _
    $region3: #{tpu_custom_call.1} parent=1 // pred_check_branch
      %11 = sbr.rel (0) target = $region5
    $region4: #{tpu_custom_call.1} parent=1 // pred_region
      %s13 = ssub.s32 128, 128
      %14 = vsyncadd [#allocation3], %s13
      %s16 = sshll.u32 [#allocation2], 4
      %s17 = int_to_ptr.vmem [resolvable:$true] %s16
      %19 = dma.hbm_to_vmem [thread:$0]  %s0, 128, %s17, [#allocation3]
    $region5: #{tpu_custom_call.1} parent=1 // pred_fallthru
      _
    // Predicated region
    $region6: #{tpu_custom_call.1} parent=1 // pred_check
      _
    $region7: #{tpu_custom_call.1} parent=1 // pred_check_branch
      %21 = sbr.rel (0) target = $region9
    $region8: #{tpu_custom_call.1} parent=1 // pred_region
      %s23 = ssub.s32 128, 128
      %24 = vsyncadd [#allocation6], %s23
      %s26 = sshll.u32 [#allocation5], 4
      %s27 = int_to_ptr.vmem [resolvable:$true] %s26
      %29 = dma.hbm_to_vmem [thread:$0]  %s1, 128, %s27, [#allocation6]
    $region9: #{tpu_custom_call.1} parent=1 // pred_fallthru
      _
    // Predicated region
    $region10: #{tpu_custom_call.1} parent=1 // pred_check
      _
    $region11: #{tpu_custom_call.1} parent=1 // pred_check_branch
      %31 = sbr.rel (0) target = $region13
    $region12: #{tpu_custom_call.1} parent=1 // pred_region
      %32 = dma.done [#allocation3], 128
    $region13: #{tpu_custom_call.1} parent=1 // pred_fallthru
      _
    // Predicated region
    $region14: #{tpu_custom_call.1} parent=1 // pred_check
      _
    $region15: #{tpu_custom_call.1} parent=1 // pred_check_branch
      %34 = sbr.rel (0) target = $region17
    $region16: #{tpu_custom_call.1} parent=1 // pred_region
      %35 = dma.done [#allocation6], 128
    $region17: #{tpu_custom_call.1} parent=1 // pred_fallthru
      _
    %v36 = vld [vmem:[#allocation2] sm:$0xff]
    %v37 = vld [vmem:[#allocation5] sm:$0xff]
    %v38 = vadd.f32 %v36, %v37
    %vm39 = vcmask 523264
    %40 = vst.msk [vmem:[#allocation7] sm:$0xff] %vm39, %v38
    // Predicated region
    $region18: #{tpu_custom_call.1} parent=1 // pred_check
      _
    $region19: #{tpu_custom_call.1} parent=1 // pred_check_branch
      %42 = sbr.rel (0) target = $region21
    $region20: #{tpu_custom_call.1} parent=1 // pred_region
      %s44 = ssub.s32 128, 128
      %45 = vsyncadd [#allocation4], %s44
      %s47 = sshll.u32 [#allocation7], 4
      %s48 = int_to_ptr.vmem [resolvable:$true] %s47
      %50 = dma.vmem_to_hbm [thread:$0]  %s48, 128, %s2, [#allocation4]
    $region21: #{tpu_custom_call.1} parent=1 // pred_fallthru
      _
    // Predicated region
    $region22: #{tpu_custom_call.1} parent=1 // pred_check
      _
    $region23: #{tpu_custom_call.1} parent=1 // pred_check_branch
      %52 = sbr.rel (0) target = $region25
    $region24: #{tpu_custom_call.1} parent=1 // pred_region
      %53 = dma.done [#allocation4], 128
    $region25: #{tpu_custom_call.1} parent=1 // pred_fallthru
      _
    %54 = vsyncpa [#allocation3], 1
    %55 = vsyncpa [#allocation6], 1
    %56 = vsyncpa [#allocation4], 1

</llo_original>
